<compile_context>
chip_gen: v5e
topology: v5e:2x2
jax: 0.10.0
libtpu: 0.0.40
codegen_flags: <defaults>
</compile_context>

<pallas_src>
import functools

import jax
import jax.numpy as jnp
from jax.experimental import pallas as pl
from jax.experimental.pallas import tpu as pltpu


def _round_up(x: int, m: int) -> int:
    return ((x + m - 1) // m) * m


def mlp_kernel(x_ref, w1_ref, b1_ref, w2_ref, b2_ref, w3_ref, b3_ref, o_ref):
    # Layer 1: bf16 operands on the MXU, f32 accumulate; bias + ReLU in f32 on the VPU.
    x = x_ref[...].astype(jnp.bfloat16)
    h1 = jnp.dot(x, w1_ref[...], preferred_element_type=jnp.float32)
    h1 = jnp.maximum(h1 + b1_ref[...], 0.0)
    # Layer 2.
    h2 = jnp.dot(h1.astype(jnp.bfloat16), w2_ref[...], preferred_element_type=jnp.float32)
    h2 = jnp.maximum(h2 + b2_ref[...], 0.0)
    # Output layer (the PyTorch module applies ReLU here as well).
    out = jnp.dot(h2.astype(jnp.bfloat16), w3_ref[...], preferred_element_type=jnp.float32)
    out = jnp.maximum(out + b3_ref[...], 0.0)
    o_ref[...] = out.astype(o_ref.dtype)  # lane-dense store (output dim padded to 128)


def prepare_params(w1, b1, w2, b2, w3, b3):
    """Pad feature dims to lane multiples and cast to bf16 ONCE, outside the hot path.

    Zero padding is exact for Linear+ReLU (padded columns stay identically zero).
    w1's first dim keeps the natural in_features so x never needs a padded HBM copy.
    """
    in_f, h1_f = w1.shape
    h2_f = w2.shape[1]
    out_f = w3.shape[1]
    # 128 = lane width. (On v6e/v7x, 256-multiples would fill the 256-wide MXU even
    # better for large hidden dims; 128 keeps the footprint minimal for small ones.)
    h1_p, h2_p, out_p = (_round_up(d, 128) for d in (h1_f, h2_f, out_f))
    bf16, f32 = jnp.bfloat16, jnp.float32

    w1p = jnp.zeros((in_f, h1_p), bf16).at[:, :h1_f].set(w1.astype(bf16))
    w2p = jnp.zeros((h1_p, h2_p), bf16).at[:h1_f, :h2_f].set(w2.astype(bf16))
    w3p = jnp.zeros((h2_p, out_p), bf16).at[:h2_f, :out_f].set(w3.astype(bf16))
    # Biases stay f32 (bias-add + ReLU run on the VPU in f32).
    b1p = jnp.zeros((1, h1_p), f32).at[:, :h1_f].set(b1.reshape(1, -1).astype(f32))
    b2p = jnp.zeros((1, h2_p), f32).at[:, :h2_f].set(b2.reshape(1, -1).astype(f32))
    b3p = jnp.zeros((1, out_p), f32).at[:, :out_f].set(b3.reshape(1, -1).astype(f32))
    return w1p, b1p, w2p, b2p, w3p, b3p


@functools.partial(jax.jit, static_argnames=("out_features", "tile_b", "weight_buffers"))
def _mlp_forward_impl(x, w1p, b1p, w2p, b2p, w3p, b3p, *, out_features,
                      tile_b=512, weight_buffers=1):
    batch, in_f = x.shape
    h1_p = w1p.shape[1]
    h2_p = w2p.shape[1]
    out_p = w3p.shape[1]

    # Batch tile: multiple of 8 (sublane). When the batch allows, ensure >= 2 grid
    # steps so the "parallel" batch axis can shard across v7x's two TensorCores
    # (harmless on single-TC v5e/v6e).
    tb = min(tile_b, _round_up(batch, 8))
    if batch > 8:
        tb = min(tb, _round_up(pl.cdiv(batch, 2), 8))
    grid = (pl.cdiv(batch, tb),)

    # Explicit VMEM budget (scoped defaults are 16/32 MiB; v7x physical is 64 MiB/TC).
    vmem_need = (
        weight_buffers * 2 * (in_f * h1_p + h1_p * h2_p + h2_p * out_p)  # bf16 weights
        + 4 * (h1_p + h2_p + out_p)                                      # f32 biases
        + 2 * tb * (in_f * x.dtype.itemsize + out_p * 4)                 # x/out double buffers
        + 4 * tb * (h1_p + h2_p + out_p)                                 # f32 intermediates
    )
    vmem_limit = int(min(max(2 * vmem_need, 32 * 1024 * 1024), 64 * 1024 * 1024))

    def resident_spec(shape):
        # Grid-invariant operand: DMA'd once, stays in VMEM across all batch tiles.
        # A single buffer suffices; the default double buffer only burns VMEM.
        if weight_buffers == 1:
            return pl.BlockSpec(shape, lambda i: (0, 0), pipeline_mode=pl.Buffered(1))
        return pl.BlockSpec(shape, lambda i: (0, 0))

    out_padded = pl.pallas_call(
        mlp_kernel,
        out_shape=jax.ShapeDtypeStruct((batch, out_p), jnp.float32),
        grid=grid,
        in_specs=[
            # x: one batch tile per grid step; last dim stays at the natural in_f
            # (block dim == full array dim), edge tile masked by Pallas.
            pl.BlockSpec((tb, in_f), lambda i: (i, 0)),
            resident_spec((in_f, h1_p)),
            resident_spec((1, h1_p)),
            resident_spec((h1_p, h2_p)),
            resident_spec((1, h2_p)),
            resident_spec((h2_p, out_p)),
            resident_spec((1, out_p)),
        ],
        out_specs=pl.BlockSpec((tb, out_p), lambda i: (i, 0)),
        compiler_params=pltpu.CompilerParams(
            dimension_semantics=("parallel",),
            vmem_limit_bytes=vmem_limit,
        ),
    )(x, w1p, b1p, w2p, b2p, w3p, b3p)

    # Padded output columns are relu(0 + 0) = 0; slice the real ones back out.
    return out_padded[:, :out_features]


def mlp_forward(x, params, *, out_features, tile_b=512):
    # Prefer single-buffered resident weights (halves their VMEM footprint); fall
    # back to the default double buffer if this JAX build rejects pl.Buffered(1).
    try:
        return _mlp_forward_impl(x, *params, out_features=out_features,
                                 tile_b=tile_b, weight_buffers=1)
    except Exception:
        return _mlp_forward_impl(x, *params, out_features=out_features,
                                 tile_b=tile_b, weight_buffers=2)


def init_params(key, input_size, hidden_size_1, hidden_size_2, output_size):
    # Deterministic init mimicking torch.nn.Linear's U(-1/sqrt(fan_in), 1/sqrt(fan_in)).
    ks = jax.random.split(key, 6)

    def lin(kw, kb, fan_in, fan_out):
        bound = 1.0 / float(fan_in) ** 0.5
        w = jax.random.uniform(kw, (fan_in, fan_out), jnp.float32, -bound, bound)
        b = jax.random.uniform(kb, (fan_out,), jnp.float32, -bound, bound)
        return w, b

    w1, b1 = lin(ks[0], ks[1], input_size, hidden_size_1)
    w2, b2 = lin(ks[2], ks[3], hidden_size_1, hidden_size_2)
    w3, b3 = lin(ks[4], ks[5], hidden_size_2, output_size)
    return w1, b1, w2, b2, w3, b3


if __name__ == "__main__":
    # Matches the script's data: X is (5, 2) float32, output_size = 1.
    input_size, hidden_size_1, hidden_size_2, output_size = 2, 32, 32, 1

    X = jnp.array([[1, 2], [2, 4], [3, 6], [4, 8], [5, 10]], dtype=jnp.float32)

    key = jax.random.PRNGKey(0)
    w1, b1, w2, b2, w3, b3 = init_params(key, input_size, hidden_size_1,
                                         hidden_size_2, output_size)
    params = prepare_params(w1, b1, w2, b2, w3, b3)  # pad + cast once, off the hot path

    out = mlp_forward(X, params, out_features=output_size)
    jax.block_until_ready(out)

    # Pure-JAX reference mirroring the kernel's bf16-operand / f32-accumulate numerics,
    # so the comparison isolates kernel correctness from the intended bf16 quantization.
    bf16, f32 = jnp.bfloat16, jnp.float32

    def dense_relu(h, w, b):
        y = jnp.dot(h.astype(bf16), w.astype(bf16), preferred_element_type=f32)
        return jnp.maximum(y + b, 0.0)

    ref = dense_relu(dense_relu(dense_relu(X, w1, b1), w2, b2), w3, b3)

    assert out.shape == (5, 1), out.shape
    assert jnp.allclose(out, ref, atol=2e-3, rtol=2e-3), (out, ref)

    print("KERNEL_OK")
</pallas_src>

<mosaic_0001>
module attributes {stable_mosaic.version = 11 : i64} {
  func.func @mlp_kernel(%arg0: i32, %arg1: memref<8x2xf32, #tpu.memory_space<vmem>>, %arg2: memref<2x128xbf16, #tpu.memory_space<vmem>>, %arg3: memref<1x128xf32, #tpu.memory_space<vmem>>, %arg4: memref<128x128xbf16, #tpu.memory_space<vmem>>, %arg5: memref<1x128xf32, #tpu.memory_space<vmem>>, %arg6: memref<128x128xbf16, #tpu.memory_space<vmem>>, %arg7: memref<1x128xf32, #tpu.memory_space<vmem>>, %arg8: memref<8x128xf32, #tpu.memory_space<vmem>>) attributes {dimension_semantics = [#tpu.dimension_semantics<parallel>], iteration_bounds = array<i64: 1>, scalar_prefetch = 0 : i64, scratch_operands = 0 : i64, tpu.core_type = #tpu.core_type<tc>, window_params = [{transform_indices = @transform_0, window_bounds = array<i64: 8, 2>}, {pipeline_mode = #tpu.pipeline_mode<synchronous>, transform_indices = @transform_1, window_bounds = array<i64: 2, 128>}, {pipeline_mode = #tpu.pipeline_mode<synchronous>, transform_indices = @transform_2, window_bounds = array<i64: 1, 128>}, {pipeline_mode = #tpu.pipeline_mode<synchronous>, transform_indices = @transform_3, window_bounds = array<i64: 128, 128>}, {pipeline_mode = #tpu.pipeline_mode<synchronous>, transform_indices = @transform_4, window_bounds = array<i64: 1, 128>}, {pipeline_mode = #tpu.pipeline_mode<synchronous>, transform_indices = @transform_5, window_bounds = array<i64: 128, 128>}, {pipeline_mode = #tpu.pipeline_mode<synchronous>, transform_indices = @transform_6, window_bounds = array<i64: 1, 128>}, {transform_indices = @transform_7, window_bounds = array<i64: 8, 128>}]} {
    %c0 = arith.constant 0 : index
    %c0_0 = arith.constant 0 : index
    %0 = vector.load %arg1[%c0, %c0_0] : memref<8x2xf32, #tpu.memory_space<vmem>>, vector<8x2xf32>
    %1 = arith.truncf %0 : vector<8x2xf32> to vector<8x2xbf16>
    %c0_1 = arith.constant 0 : index
    %c0_2 = arith.constant 0 : index
    %2 = vector.load %arg2[%c0_1, %c0_2] : memref<2x128xbf16, #tpu.memory_space<vmem>>, vector<2x128xbf16>
    %cst = arith.constant dense<0.000000e+00> : vector<8x128xf32>
    %3 = tpu.matmul %1, %2, %cst {dimension_numbers = #tpu.dot_dimension_numbers<[1], [0], [0], [1], [0, 0, 1, 1], [], []>} : vector<8x2xbf16>, vector<2x128xbf16>, vector<8x128xf32> -> vector<8x128xf32>
    %c0_3 = arith.constant 0 : index
    %c0_4 = arith.constant 0 : index
    %4 = vector.load %arg3[%c0_3, %c0_4] : memref<1x128xf32, #tpu.memory_space<vmem>>, vector<1x128xf32>
    %5 = vector.broadcast %4 : vector<1x128xf32> to vector<8x128xf32>
    %6 = arith.addf %3, %5 : vector<8x128xf32>
    %cst_5 = arith.constant 0.000000e+00 : f32
    %7 = vector.broadcast %cst_5 : f32 to vector<8x128xf32>
    %8 = arith.maximumf %6, %7 : vector<8x128xf32>
    %9 = arith.truncf %8 : vector<8x128xf32> to vector<8x128xbf16>
    %c0_6 = arith.constant 0 : index
    %c0_7 = arith.constant 0 : index
    %10 = vector.load %arg4[%c0_6, %c0_7] : memref<128x128xbf16, #tpu.memory_space<vmem>>, vector<128x128xbf16>
    %cst_8 = arith.constant dense<0.000000e+00> : vector<8x128xf32>
    %11 = tpu.matmul %9, %10, %cst_8 {dimension_numbers = #tpu.dot_dimension_numbers<[1], [0], [0], [1], [0, 0, 1, 1], [], []>} : vector<8x128xbf16>, vector<128x128xbf16>, vector<8x128xf32> -> vector<8x128xf32>
    %c0_9 = arith.constant 0 : index
    %c0_10 = arith.constant 0 : index
    %12 = vector.load %arg5[%c0_9, %c0_10] : memref<1x128xf32, #tpu.memory_space<vmem>>, vector<1x128xf32>
    %13 = vector.broadcast %12 : vector<1x128xf32> to vector<8x128xf32>
    %14 = arith.addf %11, %13 : vector<8x128xf32>
    %cst_11 = arith.constant 0.000000e+00 : f32
    %15 = vector.broadcast %cst_11 : f32 to vector<8x128xf32>
    %16 = arith.maximumf %14, %15 : vector<8x128xf32>
    %17 = arith.truncf %16 : vector<8x128xf32> to vector<8x128xbf16>
    %c0_12 = arith.constant 0 : index
    %c0_13 = arith.constant 0 : index
    %18 = vector.load %arg6[%c0_12, %c0_13] : memref<128x128xbf16, #tpu.memory_space<vmem>>, vector<128x128xbf16>
    %cst_14 = arith.constant dense<0.000000e+00> : vector<8x128xf32>
    %19 = tpu.matmul %17, %18, %cst_14 {dimension_numbers = #tpu.dot_dimension_numbers<[1], [0], [0], [1], [0, 0, 1, 1], [], []>} : vector<8x128xbf16>, vector<128x128xbf16>, vector<8x128xf32> -> vector<8x128xf32>
    %c0_15 = arith.constant 0 : index
    %c0_16 = arith.constant 0 : index
    %20 = vector.load %arg7[%c0_15, %c0_16] : memref<1x128xf32, #tpu.memory_space<vmem>>, vector<1x128xf32>
    %21 = vector.broadcast %20 : vector<1x128xf32> to vector<8x128xf32>
    %22 = arith.addf %19, %21 : vector<8x128xf32>
    %cst_17 = arith.constant 0.000000e+00 : f32
    %23 = vector.broadcast %cst_17 : f32 to vector<8x128xf32>
    %24 = arith.maximumf %22, %23 : vector<8x128xf32>
    %c0_18 = arith.constant 0 : index
    %c0_19 = arith.constant 0 : index
    %25 = vector.load %arg8[%c0_18, %c0_19] : memref<8x128xf32, #tpu.memory_space<vmem>>, vector<8x128xf32>
    tpu.vector_store %arg8[%c0_18, %c0_19], %24 {strides = array<i32>} : memref<8x128xf32, #tpu.memory_space<vmem>>, vector<8x128xf32>,
    return
  }
  func.func @transform_0(%arg0: i32) -> (i32, i32) {
    %c0_i32 = arith.constant 0 : i32
    %c0_i32_0 = arith.constant 0 : i32
    return %arg0, %c0_i32 : i32, i32
  }
  func.func @transform_1(%arg0: i32) -> (i32, i32) {
    %c0_i32 = arith.constant 0 : i32
    %c0_i32_0 = arith.constant 0 : i32
    %c0_i32_1 = arith.constant 0 : i32
    return %c0_i32, %c0_i32_0 : i32, i32
  }
  func.func @transform_2(%arg0: i32) -> (i32, i32) {
    %c0_i32 = arith.constant 0 : i32
    %c0_i32_0 = arith.constant 0 : i32
    %c0_i32_1 = arith.constant 0 : i32
    return %c0_i32, %c0_i32_0 : i32, i32
  }
  func.func @transform_3(%arg0: i32) -> (i32, i32) {
    %c0_i32 = arith.constant 0 : i32
    %c0_i32_0 = arith.constant 0 : i32
    %c0_i32_1 = arith.constant 0 : i32
    return %c0_i32, %c0_i32_0 : i32, i32
  }
  func.func @transform_4(%arg0: i32) -> (i32, i32) {
    %c0_i32 = arith.constant 0 : i32
    %c0_i32_0 = arith.constant 0 : i32
    %c0_i32_1 = arith.constant 0 : i32
    return %c0_i32, %c0_i32_0 : i32, i32
  }
  func.func @transform_5(%arg0: i32) -> (i32, i32) {
    %c0_i32 = arith.constant 0 : i32
    %c0_i32_0 = arith.constant 0 : i32
    %c0_i32_1 = arith.constant 0 : i32
    return %c0_i32, %c0_i32_0 : i32, i32
  }
  func.func @transform_6(%arg0: i32) -> (i32, i32) {
    %c0_i32 = arith.constant 0 : i32
    %c0_i32_0 = arith.constant 0 : i32
    %c0_i32_1 = arith.constant 0 : i32
    return %c0_i32, %c0_i32_0 : i32, i32
  }
  func.func @transform_7(%arg0: i32) -> (i32, i32) {
    %c0_i32 = arith.constant 0 : i32
    %c0_i32_0 = arith.constant 0 : i32
    return %arg0, %c0_i32 : i32, i32
  }
}

module attributes {stable_mosaic.version = 11 : i64} {
  func.func @mlp_kernel(%arg0: i32, %arg1: memref<8x2xf32, #tpu.memory_space<vmem>>, %arg2: memref<2x128xbf16, #tpu.memory_space<vmem>>, %arg3: memref<1x128xf32, #tpu.memory_space<vmem>>, %arg4: memref<128x128xbf16, #tpu.memory_space<vmem>>, %arg5: memref<1x128xf32, #tpu.memory_space<vmem>>, %arg6: memref<128x128xbf16, #tpu.memory_space<vmem>>, %arg7: memref<1x128xf32, #tpu.memory_space<vmem>>, %arg8: memref<8x128xf32, #tpu.memory_space<vmem>>) attributes {dimension_semantics = [#tpu.dimension_semantics<parallel>], iteration_bounds = array<i64: 1>, scalar_prefetch = 0 : i64, scratch_operands = 0 : i64, tpu.core_type = #tpu.core_type<tc>, window_params = [{transform_indices = @transform_0, window_bounds = array<i64: 8, 2>}, {pipeline_mode = #tpu.pipeline_mode<synchronous>, transform_indices = @transform_1, window_bounds = array<i64: 2, 128>}, {pipeline_mode = #tpu.pipeline_mode<synchronous>, transform_indices = @transform_2, window_bounds = array<i64: 1, 128>}, {pipeline_mode = #tpu.pipeline_mode<synchronous>, transform_indices = @transform_3, window_bounds = array<i64: 128, 128>}, {pipeline_mode = #tpu.pipeline_mode<synchronous>, transform_indices = @transform_4, window_bounds = array<i64: 1, 128>}, {pipeline_mode = #tpu.pipeline_mode<synchronous>, transform_indices = @transform_5, window_bounds = array<i64: 128, 128>}, {pipeline_mode = #tpu.pipeline_mode<synchronous>, transform_indices = @transform_6, window_bounds = array<i64: 1, 128>}, {transform_indices = @transform_7, window_bounds = array<i64: 8, 128>}]} {
    %c0 = arith.constant 0 : index
    %c0_0 = arith.constant 0 : index
    %0 = vector.load %arg1[%c0, %c0_0] : memref<8x2xf32, #tpu.memory_space<vmem>>, vector<8x2xf32>
    %1 = arith.truncf %0 : vector<8x2xf32> to vector<8x2xbf16>
    %c0_1 = arith.constant 0 : index
    %c0_2 = arith.constant 0 : index
    %2 = vector.load %arg2[%c0_1, %c0_2] : memref<2x128xbf16, #tpu.memory_space<vmem>>, vector<2x128xbf16>
    %cst = arith.constant dense<0.000000e+00> : vector<8x128xf32>
    %3 = tpu.matmul %1, %2, %cst {dimension_numbers = #tpu.dot_dimension_numbers<[1], [0], [0], [1], [0, 0, 1, 1], [], []>} : vector<8x2xbf16>, vector<2x128xbf16>, vector<8x128xf32> -> vector<8x128xf32>
    %c0_3 = arith.constant 0 : index
    %c0_4 = arith.constant 0 : index
    %4 = vector.load %arg3[%c0_3, %c0_4] : memref<1x128xf32, #tpu.memory_space<vmem>>, vector<1x128xf32>
    %5 = vector.broadcast %4 : vector<1x128xf32> to vector<8x128xf32>
    %6 = arith.addf %3, %5 : vector<8x128xf32>
    %cst_5 = arith.constant 0.000000e+00 : f32
    %7 = vector.broadcast %cst_5 : f32 to vector<8x128xf32>
    %8 = arith.maximumf %6, %7 : vector<8x128xf32>
    %9 = arith.truncf %8 : vector<8x128xf32> to vector<8x128xbf16>
    %c0_6 = arith.constant 0 : index
    %c0_7 = arith.constant 0 : index
    %10 = vector.load %arg4[%c0_6, %c0_7] : memref<128x128xbf16, #tpu.memory_space<vmem>>, vector<128x128xbf16>
    %cst_8 = arith.constant dense<0.000000e+00> : vector<8x128xf32>
    %11 = tpu.matmul %9, %10, %cst_8 {dimension_numbers = #tpu.dot_dimension_numbers<[1], [0], [0], [1], [0, 0, 1, 1], [], []>} : vector<8x128xbf16>, vector<128x128xbf16>, vector<8x128xf32> -> vector<8x128xf32>
    %c0_9 = arith.constant 0 : index
    %c0_10 = arith.constant 0 : index
    %12 = vector.load %arg5[%c0_9, %c0_10] : memref<1x128xf32, #tpu.memory_space<vmem>>, vector<1x128xf32>
    %13 = vector.broadcast %12 : vector<1x128xf32> to vector<8x128xf32>
    %14 = arith.addf %11, %13 : vector<8x128xf32>
    %cst_11 = arith.constant 0.000000e+00 : f32
    %15 = vector.broadcast %cst_11 : f32 to vector<8x128xf32>
    %16 = arith.maximumf %14, %15 : vector<8x128xf32>
    %17 = arith.truncf %16 : vector<8x128xf32> to vector<8x128xbf16>
    %c0_12 = arith.constant 0 : index
    %c0_13 = arith.constant 0 : index
    %18 = vector.load %arg6[%c0_12, %c0_13] : memref<128x128xbf16, #tpu.memory_space<vmem>>, vector<128x128xbf16>
    %cst_14 = arith.constant dense<0.000000e+00> : vector<8x128xf32>
    %19 = tpu.matmul %17, %18, %cst_14 {dimension_numbers = #tpu.dot_dimension_numbers<[1], [0], [0], [1], [0, 0, 1, 1], [], []>} : vector<8x128xbf16>, vector<128x128xbf16>, vector<8x128xf32> -> vector<8x128xf32>
    %c0_15 = arith.constant 0 : index
    %c0_16 = arith.constant 0 : index
    %20 = vector.load %arg7[%c0_15, %c0_16] : memref<1x128xf32, #tpu.memory_space<vmem>>, vector<1x128xf32>
    %21 = vector.broadcast %20 : vector<1x128xf32> to vector<8x128xf32>
    %22 = arith.addf %19, %21 : vector<8x128xf32>
    %cst_17 = arith.constant 0.000000e+00 : f32
    %23 = vector.broadcast %cst_17 : f32 to vector<8x128xf32>
    %24 = arith.maximumf %22, %23 : vector<8x128xf32>
    %c0_18 = arith.constant 0 : index
    %c0_19 = arith.constant 0 : index
    %25 = vector.load %arg8[%c0_18, %c0_19] : memref<8x128xf32, #tpu.memory_space<vmem>>, vector<8x128xf32>
    tpu.vector_store %arg8[%c0_18, %c0_19], %24 {strides = array<i32>} : memref<8x128xf32, #tpu.memory_space<vmem>>, vector<8x128xf32>,
    return
  }
  func.func @transform_0(%arg0: i32) -> (i32, i32) {
    %c0_i32 = arith.constant 0 : i32
    %c0_i32_0 = arith.constant 0 : i32
    return %arg0, %c0_i32 : i32, i32
  }
  func.func @transform_1(%arg0: i32) -> (i32, i32) {
    %c0_i32 = arith.constant 0 : i32
    %c0_i32_0 = arith.constant 0 : i32
    %c0_i32_1 = arith.constant 0 : i32
    return %c0_i32, %c0_i32_0 : i32, i32
  }
  func.func @transform_2(%arg0: i32) -> (i32, i32) {
    %c0_i32 = arith.constant 0 : i32
    %c0_i32_0 = arith.constant 0 : i32
    %c0_i32_1 = arith.constant 0 : i32
    return %c0_i32, %c0_i32_0 : i32, i32
  }
  func.func @transform_3(%arg0: i32) -> (i32, i32) {
    %c0_i32 = arith.constant 0 : i32
    %c0_i32_0 = arith.constant 0 : i32
    %c0_i32_1 = arith.constant 0 : i32
    return %c0_i32, %c0_i32_0 : i32, i32
  }
  func.func @transform_4(%arg0: i32) -> (i32, i32) {
    %c0_i32 = arith.constant 0 : i32
    %c0_i32_0 = arith.constant 0 : i32
    %c0_i32_1 = arith.constant 0 : i32
    return %c0_i32, %c0_i32_0 : i32, i32
  }
  func.func @transform_5(%arg0: i32) -> (i32, i32) {
    %c0_i32 = arith.constant 0 : i32
    %c0_i32_0 = arith.constant 0 : i32
    %c0_i32_1 = arith.constant 0 : i32
    return %c0_i32, %c0_i32_0 : i32, i32
  }
  func.func @transform_6(%arg0: i32) -> (i32, i32) {
    %c0_i32 = arith.constant 0 : i32
    %c0_i32_0 = arith.constant 0 : i32
    %c0_i32_1 = arith.constant 0 : i32
    return %c0_i32, %c0_i32_0 : i32, i32
  }
  func.func @transform_7(%arg0: i32) -> (i32, i32) {
    %c0_i32 = arith.constant 0 : i32
    %c0_i32_0 = arith.constant 0 : i32
    return %arg0, %c0_i32 : i32, i32
  }
}

</mosaic_0001>

<llo_original>
// kernel: _mlp_forward_impl.1
$region0: #{_mlp_forward_impl.1}
  #allocation0 [shape = 'u32[]', space=smem, size = 0x4, offset = 0x4, fixed_abs, tag = 'smem constant byte address 0x4 - core index']
  #allocation1 [shape = 'u32[72,128]{1,0:T(1,128)}', space=vmem, size = 0x9000, scoped, tag = 'internal scratch']
  %s0 = inlined_call_operand.vmem [shape: f32[5,2], index: 0, kind: input, shape index: {}]
  %s1 = inlined_call_operand.vmem [shape: bf16[2,128], index: 1, kind: input, shape index: {}]
  %s2 = inlined_call_operand.vmem [shape: f32[1,128], index: 2, kind: input, shape index: {}]
  %s3 = inlined_call_operand.hbm [shape: bf16[128,128], index: 3, kind: input, shape index: {}]
  %s4 = inlined_call_operand.vmem [shape: f32[1,128], index: 4, kind: input, shape index: {}]
  %s5 = inlined_call_operand.hbm [shape: bf16[128,128], index: 5, kind: input, shape index: {}]
  %s6 = inlined_call_operand.vmem [shape: f32[1,128], index: 6, kind: input, shape index: {}]
  %s7 = inlined_call_operand.vmem [shape: f32[5,128], index: 7, kind: output, shape index: {}]
  %s8 = sld [smem:[#allocation0]]
  $region46: #{_mlp_forward_impl.1} parent=0
    _
  %s10 = ssub.s32 1, %s8
  %s11 = scalar_select 0, %s10, %s8
  $region1: #{_mlp_forward_impl.1} parent=0
    #allocation2 [shape = 'u8[32768]{0}', space=vmem, size = 0x8000, scoped, tag = 'input window, operand 3, single buffered']
    #allocation3 [shape = 's32[1]{0}', space=sflag, size = 0x4, scoped, tag = 'scoped memory for _mlp_forward_impl.1']
    #allocation4 [shape = 'u8[32768]{0}', space=vmem, size = 0x8000, scoped, tag = 'input window, operand 5, single buffered']
    #allocation5 [shape = 's32[1]{0}', space=sflag, size = 0x4, scoped, tag = 'scoped memory for _mlp_forward_impl.1']
    %12 = vsyncpa [#allocation3], 0
    %13 = vsyncpa [#allocation5], 0
    // Predicated region
    $region2: #{_mlp_forward_impl.1} parent=1 // pred_check
      _
    $region3: #{_mlp_forward_impl.1} parent=1 // pred_check_branch
      %15 = sbr.rel (0) target = $region5
    $region4: #{_mlp_forward_impl.1} parent=1 // pred_region
      _
    $region5: #{_mlp_forward_impl.1} parent=1 // pred_fallthru
      _
    // Predicated region
    $region6: #{_mlp_forward_impl.1} parent=1 // pred_check
      _
    $region7: #{_mlp_forward_impl.1} parent=1 // pred_check_branch
      %17 = sbr.rel (0) target = $region9
    $region8: #{_mlp_forward_impl.1} parent=1 // pred_region
      _
    $region9: #{_mlp_forward_impl.1} parent=1 // pred_fallthru
      _
    // Predicated region
    $region10: #{_mlp_forward_impl.1} parent=1 // pred_check
      _
    $region11: #{_mlp_forward_impl.1} parent=1 // pred_check_branch
      %19 = sbr.rel (0) target = $region13
    $region12: #{_mlp_forward_impl.1} parent=1 // pred_region
      _
    $region13: #{_mlp_forward_impl.1} parent=1 // pred_fallthru
      _
    // Predicated region
    $region14: #{_mlp_forward_impl.1} parent=1 // pred_check
      _
    $region15: #{_mlp_forward_impl.1} parent=1 // pred_check_branch
      %21 = sbr.rel (0) target = $region17
    $region16: #{_mlp_forward_impl.1} parent=1 // pred_region
      %23 = vsyncadd [#allocation3], 0
      %s24 = sshll.u32 %s3, 4
      %s25 = int_to_ptr.hbm [resolvable:$true] %s24
      %s26 = sshll.u32 [#allocation2], 4
      %s27 = int_to_ptr.vmem [resolvable:$true] %s26
      %32 = dma.hbm_to_vmem [thread:$0]  %s25, 1024, %s27, [#allocation3], 64, 64, 4
    $region17: #{_mlp_forward_impl.1} parent=1 // pred_fallthru
      _
    // Predicated region
    $region18: #{_mlp_forward_impl.1} parent=1 // pred_check
      _
    $region19: #{_mlp_forward_impl.1} parent=1 // pred_check_branch
      %34 = sbr.rel (0) target = $region21
    $region20: #{_mlp_forward_impl.1} parent=1 // pred_region
      _
    $region21: #{_mlp_forward_impl.1} parent=1 // pred_fallthru
      _
    // Predicated region
    $region22: #{_mlp_forward_impl.1} parent=1 // pred_check
      _
    $region23: #{_mlp_forward_impl.1} parent=1 // pred_check_branch
      %36 = sbr.rel (0) target = $region25
    $region24: #{_mlp_forward_impl.1} parent=1 // pred_region
      %38 = vsyncadd [#allocation5], 0
      %s39 = sshll.u32 %s5, 4
      %s40 = int_to_ptr.hbm [resolvable:$true] %s39
      %s41 = sshll.u32 [#allocation4], 4
      %s42 = int_to_ptr.vmem [resolvable:$true] %s41
      %47 = dma.hbm_to_vmem [thread:$0]  %s40, 1024, %s42, [#allocation5], 64, 64, 4
    $region25: #{_mlp_forward_impl.1} parent=1 // pred_fallthru
      _
    // Predicated region
    $region26: #{_mlp_forward_impl.1} parent=1 // pred_check
      _
    $region27: #{_mlp_forward_impl.1} parent=1 // pred_check_branch
      %49 = sbr.rel (0) target = $region29
    $region28: #{_mlp_forward_impl.1} parent=1 // pred_region
      _
    $region29: #{_mlp_forward_impl.1} parent=1 // pred_fallthru
      _
    // Predicated region
    $region30: #{_mlp_forward_impl.1} parent=1 // pred_check
      _
    $region31: #{_mlp_forward_impl.1} parent=1 // pred_check_branch
      %51 = sbr.rel (0) target = $region33
    $region32: #{_mlp_forward_impl.1} parent=1 // pred_region
      %53 = dma.done [#allocation3], 1024
    $region33: #{_mlp_forward_impl.1} parent=1 // pred_fallthru
      _
    // Predicated region
    $region34: #{_mlp_forward_impl.1} parent=1 // pred_check
      _
    $region35: #{_mlp_forward_impl.1} parent=1 // pred_check_branch
      %55 = sbr.rel (0) target = $region37
    $region36: #{_mlp_forward_impl.1} parent=1 // pred_region
      %57 = dma.done [#allocation5], 1024
    $region37: #{_mlp_forward_impl.1} parent=1 // pred_fallthru
      _
    %v59 = vld [vmem:[%s0] sm:$0xff]
    %v60 = vpack.c.bf16 %v59, %v59
    %v61 = vld [vmem:[%s1] sm:$0x1]
    %v62 = vld [vmem:[%s2] sm:$0x1]
    %v64 = vperm.slane %v62, 0
    %vm66 = vcmask 15360
    %v68 = vsel %vm66, %v60, 0
    %vm70 = vcmask 1040384
    %v72 = vsel %vm70, %v61, 0
    %74 = vmatpush.bf16.msra.mxu0 0
    %75 = vmatpush.bf16.msra.mxu0 0
    %76 = vmatpush.bf16.msra.mxu0 0
    %77 = vmatpush.bf16.msra.mxu0 0
    %78 = vmatpush.bf16.msra.mxu0 0
    %79 = vmatpush.bf16.msra.mxu0 0
    %80 = vmatpush.bf16.msra.mxu0 0
    %81 = vmatpush.bf16.msra.mxu0 %v72
    %82 = vmatmul.bf16.gmra.mxu0 %v68
    %v83 = vpop.f32.mrf.mxu0
    %v84 = vadd.f32 %v64, %v83
    %v85 = vpop.f32.mrf.mxu0
    %86 = vdwg.mxu0
    %v87 = vmax.f32 %v84, 0.0
    %v88 = vpack.c.bf16 %v87, %v87
    %v89 = vld [vmem:[#allocation2] sm:$0xf]
    %v90 = vld [vmem:[#allocation2 + $0x4] sm:$0xf]
    %v91 = vld [vmem:[#allocation2 + $0x8] sm:$0xf]
    %v92 = vld [vmem:[#allocation2 + $0xc] sm:$0xf]
    %v93 = vld [vmem:[#allocation2 + $0x10] sm:$0xf]
    %v94 = vld [vmem:[#allocation2 + $0x14] sm:$0xf]
    %v95 = vld [vmem:[#allocation2 + $0x18] sm:$0xf]
    %v96 = vld [vmem:[#allocation2 + $0x1c] sm:$0xf]
    %v97 = vld [vmem:[#allocation2 + $0x20] sm:$0xf]
    %v98 = vld [vmem:[#allocation2 + $0x24] sm:$0xf]
    %v99 = vld [vmem:[#allocation2 + $0x28] sm:$0xf]
    %v100 = vld [vmem:[#allocation2 + $0x2c] sm:$0xf]
    %v101 = vld [vmem:[#allocation2 + $0x30] sm:$0xf]
    %v102 = vld [vmem:[#allocation2 + $0x34] sm:$0xf]
    %v103 = vld [vmem:[#allocation2 + $0x38] sm:$0xf]
    %v104 = vld [vmem:[#allocation2 + $0x3c] sm:$0xf]
    %v105 = vld [vmem:[%s4] sm:$0x1]
    %v107 = vperm.slane %v105, 0
    %v125 = vunpack.c.l.b16 %v89
    %v126 = vunpack.c.l.b16 %v90
    %v127 = vunpack.c.l.b16 %v91
    %v128 = vunpack.c.l.b16 %v92
    %v129 = vunpack.c.l.b16 %v93
    %v130 = vunpack.c.l.b16 %v94
    %v131 = vunpack.c.l.b16 %v95
    %v132 = vunpack.c.l.b16 %v96
    %v133 = vunpack.c.l.b16 %v97
    %v134 = vunpack.c.l.b16 %v98
    %v135 = vunpack.c.l.b16 %v99
    %v136 = vunpack.c.l.b16 %v100
    %v137 = vunpack.c.l.b16 %v101
    %v138 = vunpack.c.l.b16 %v102
    %v139 = vunpack.c.l.b16 %v103
    %v140 = vunpack.c.l.b16 %v104
    %v141 = vpack.c.b16 %v126, %v125
    %v142 = vpack.c.b16 %v128, %v127
    %v143 = vpack.c.b16 %v130, %v129
    %v144 = vpack.c.b16 %v132, %v131
    %v145 = vpack.c.b16 %v134, %v133
    %v146 = vpack.c.b16 %v136, %v135
    %v147 = vpack.c.b16 %v138, %v137
    %v148 = vpack.c.b16 %v140, %v139
    %157 = vmatpush.bf16.msra.mxu0 %v148
    %158 = vmatpush.bf16.msra.mxu0 %v147
    %159 = vmatpush.bf16.msra.mxu0 %v146
    %160 = vmatpush.bf16.msra.mxu0 %v145
    %161 = vmatpush.bf16.msra.mxu0 %v144
    %162 = vmatpush.bf16.msra.mxu0 %v143
    %163 = vmatpush.bf16.msra.mxu0 %v142
    %164 = vmatpush.bf16.msra.mxu0 %v141
    %165 = vmatmul.bf16.gmra.mxu0 %v88
    %v166 = vpop.f32.mrf.mxu0
    %v167 = vadd.f32 %v107, %v166
    %v168 = vpop.f32.mrf.mxu0
    %169 = vdwg.mxu0
    %v170 = vmax.f32 %v167, 0.0
    %v171 = vpack.c.bf16 %v170, %v170
    %v172 = vld [vmem:[#allocation4] sm:$0xf]
    %v173 = vld [vmem:[#allocation4 + $0x4] sm:$0xf]
    %v174 = vld [vmem:[#allocation4 + $0x8] sm:$0xf]
    %v175 = vld [vmem:[#allocation4 + $0xc] sm:$0xf]
    %v176 = vld [vmem:[#allocation4 + $0x10] sm:$0xf]
    %v177 = vld [vmem:[#allocation4 + $0x14] sm:$0xf]
    %v178 = vld [vmem:[#allocation4 + $0x18] sm:$0xf]
    %v179 = vld [vmem:[#allocation4 + $0x1c] sm:$0xf]
    %v180 = vld [vmem:[#allocation4 + $0x20] sm:$0xf]
    %v181 = vld [vmem:[#allocation4 + $0x24] sm:$0xf]
    %v182 = vld [vmem:[#allocation4 + $0x28] sm:$0xf]
    %v183 = vld [vmem:[#allocation4 + $0x2c] sm:$0xf]
    %v184 = vld [vmem:[#allocation4 + $0x30] sm:$0xf]
    %v185 = vld [vmem:[#allocation4 + $0x34] sm:$0xf]
    %v186 = vld [vmem:[#allocation4 + $0x38] sm:$0xf]
    %v187 = vld [vmem:[#allocation4 + $0x3c] sm:$0xf]
    %v188 = vld [vmem:[%s6] sm:$0x1]
    %v190 = vperm.slane %v188, 0
    %v208 = vunpack.c.l.b16 %v172
    %v209 = vunpack.c.l.b16 %v173
    %v210 = vunpack.c.l.b16 %v174
    %v211 = vunpack.c.l.b16 %v175
    %v212 = vunpack.c.l.b16 %v176
    %v213 = vunpack.c.l.b16 %v177
    %v214 = vunpack.c.l.b16 %v178
    %v215 = vunpack.c.l.b16 %v179
    %v216 = vunpack.c.l.b16 %v180
    %v217 = vunpack.c.l.b16 %v181
    %v218 = vunpack.c.l.b16 %v182
    %v219 = vunpack.c.l.b16 %v183
    %v220 = vunpack.c.l.b16 %v184
    %v221 = vunpack.c.l.b16 %v185
    %v222 = vunpack.c.l.b16 %v186
    %v223 = vunpack.c.l.b16 %v187
    %v224 = vpack.c.b16 %v209, %v208
    %v225 = vpack.c.b16 %v211, %v210
    %v226 = vpack.c.b16 %v213, %v212
    %v227 = vpack.c.b16 %v215, %v214
    %v228 = vpack.c.b16 %v217, %v216
    %v229 = vpack.c.b16 %v219, %v218
    %v230 = vpack.c.b16 %v221, %v220
    %v231 = vpack.c.b16 %v223, %v222
    %240 = vmatpush.bf16.msra.mxu0 %v231
    %241 = vmatpush.bf16.msra.mxu0 %v230
    %242 = vmatpush.bf16.msra.mxu0 %v229
    %243 = vmatpush.bf16.msra.mxu0 %v228
    %244 = vmatpush.bf16.msra.mxu0 %v227
    %245 = vmatpush.bf16.msra.mxu0 %v226
    %246 = vmatpush.bf16.msra.mxu0 %v225
    %247 = vmatpush.bf16.msra.mxu0 %v224
    %248 = vmatmul.bf16.gmra.mxu0 %v171
    %v249 = vpop.f32.mrf.mxu0
    %v250 = vadd.f32 %v190, %v249
    %v251 = vpop.f32.mrf.mxu0
    %252 = vdwg.mxu0
    %v253 = vmax.f32 %v250, 0.0
    %254 = vst [vmem:[%s7] sm:$0xff] %v253
    // Predicated region
    $region38: #{_mlp_forward_impl.1} parent=1 // pred_check
      _
    $region39: #{_mlp_forward_impl.1} parent=1 // pred_check_branch
      %256 = sbr.rel (0) target = $region41
    $region40: #{_mlp_forward_impl.1} parent=1 // pred_region
      _
    $region41: #{_mlp_forward_impl.1} parent=1 // pred_fallthru
      _
    // Predicated region
    $region42: #{_mlp_forward_impl.1} parent=1 // pred_check
      _
    $region43: #{_mlp_forward_impl.1} parent=1 // pred_check_branch
      %258 = sbr.rel (0) target = $region45
    $region44: #{_mlp_forward_impl.1} parent=1 // pred_region
      _
    $region45: #{_mlp_forward_impl.1} parent=1 // pred_fallthru
      _
    %259 = vsyncpa [#allocation3], 1
    %260 = vsyncpa [#allocation5], 1

// kernel: _mlp_forward_impl.1
$region0: #{_mlp_forward_impl.1}
  #allocation0 [shape = 'u32[]', space=smem, size = 0x4, offset = 0x4, fixed_abs, tag = 'smem constant byte address 0x4 - core index']
  #allocation1 [shape = 'u32[72,128]{1,0:T(1,128)}', space=vmem, size = 0x9000, scoped, tag = 'internal scratch']
  %s0 = inlined_call_operand.vmem [shape: f32[5,2], index: 0, kind: input, shape index: {}]
  %s1 = inlined_call_operand.vmem [shape: bf16[2,128], index: 1, kind: input, shape index: {}]
  %s2 = inlined_call_operand.vmem [shape: f32[1,128], index: 2, kind: input, shape index: {}]
  %s3 = inlined_call_operand.hbm [shape: bf16[128,128], index: 3, kind: input, shape index: {}]
  %s4 = inlined_call_operand.vmem [shape: f32[1,128], index: 4, kind: input, shape index: {}]
  %s5 = inlined_call_operand.hbm [shape: bf16[128,128], index: 5, kind: input, shape index: {}]
  %s6 = inlined_call_operand.vmem [shape: f32[1,128], index: 6, kind: input, shape index: {}]
  %s7 = inlined_call_operand.vmem [shape: f32[5,128], index: 7, kind: output, shape index: {}]
  %s8 = sld [smem:[#allocation0]]
  $region46: #{_mlp_forward_impl.1} parent=0
    _
  %s10 = ssub.s32 1, %s8
  %s11 = scalar_select 0, %s10, %s8
  $region1: #{_mlp_forward_impl.1} parent=0
    #allocation2 [shape = 'u8[32768]{0}', space=vmem, size = 0x8000, scoped, tag = 'input window, operand 3, single buffered']
    #allocation3 [shape = 's32[1]{0}', space=sflag, size = 0x4, scoped, tag = 'scoped memory for _mlp_forward_impl.1']
    #allocation4 [shape = 'u8[32768]{0}', space=vmem, size = 0x8000, scoped, tag = 'input window, operand 5, single buffered']
    #allocation5 [shape = 's32[1]{0}', space=sflag, size = 0x4, scoped, tag = 'scoped memory for _mlp_forward_impl.1']
    %12 = vsyncpa [#allocation3], 0
    %13 = vsyncpa [#allocation5], 0
    // Predicated region
    $region2: #{_mlp_forward_impl.1} parent=1 // pred_check
      _
    $region3: #{_mlp_forward_impl.1} parent=1 // pred_check_branch
      %15 = sbr.rel (0) target = $region5
    $region4: #{_mlp_forward_impl.1} parent=1 // pred_region
      _
    $region5: #{_mlp_forward_impl.1} parent=1 // pred_fallthru
      _
    // Predicated region
    $region6: #{_mlp_forward_impl.1} parent=1 // pred_check
      _
    $region7: #{_mlp_forward_impl.1} parent=1 // pred_check_branch
      %17 = sbr.rel (0) target = $region9
    $region8: #{_mlp_forward_impl.1} parent=1 // pred_region
      _
    $region9: #{_mlp_forward_impl.1} parent=1 // pred_fallthru
      _
    // Predicated region
    $region10: #{_mlp_forward_impl.1} parent=1 // pred_check
      _
    $region11: #{_mlp_forward_impl.1} parent=1 // pred_check_branch
      %19 = sbr.rel (0) target = $region13
    $region12: #{_mlp_forward_impl.1} parent=1 // pred_region
      _
    $region13: #{_mlp_forward_impl.1} parent=1 // pred_fallthru
      _
    // Predicated region
    $region14: #{_mlp_forward_impl.1} parent=1 // pred_check
      _
    $region15: #{_mlp_forward_impl.1} parent=1 // pred_check_branch
      %21 = sbr.rel (0) target = $region17
    $region16: #{_mlp_forward_impl.1} parent=1 // pred_region
      %23 = vsyncadd [#allocation3], 0
      %s24 = sshll.u32 %s3, 4
      %s25 = int_to_ptr.hbm [resolvable:$true] %s24
      %s26 = sshll.u32 [#allocation2], 4
      %s27 = int_to_ptr.vmem [resolvable:$true] %s26
      %32 = dma.hbm_to_vmem [thread:$0]  %s25, 1024, %s27, [#allocation3], 64, 64, 4
    $region17: #{_mlp_forward_impl.1} parent=1 // pred_fallthru
      _
    // Predicated region
    $region18: #{_mlp_forward_impl.1} parent=1 // pred_check
      _
    $region19: #{_mlp_forward_impl.1} parent=1 // pred_check_branch
      %34 = sbr.rel (0) target = $region21
    $region20: #{_mlp_forward_impl.1} parent=1 // pred_region
      _
    $region21: #{_mlp_forward_impl.1} parent=1 // pred_fallthru
      _
    // Predicated region
    $region22: #{_mlp_forward_impl.1} parent=1 // pred_check
      _
    $region23: #{_mlp_forward_impl.1} parent=1 // pred_check_branch
      %36 = sbr.rel (0) target = $region25
    $region24: #{_mlp_forward_impl.1} parent=1 // pred_region
      %38 = vsyncadd [#allocation5], 0
      %s39 = sshll.u32 %s5, 4
      %s40 = int_to_ptr.hbm [resolvable:$true] %s39
      %s41 = sshll.u32 [#allocation4], 4
      %s42 = int_to_ptr.vmem [resolvable:$true] %s41
      %47 = dma.hbm_to_vmem [thread:$0]  %s40, 1024, %s42, [#allocation5], 64, 64, 4
    $region25: #{_mlp_forward_impl.1} parent=1 // pred_fallthru
      _
    // Predicated region
    $region26: #{_mlp_forward_impl.1} parent=1 // pred_check
      _
    $region27: #{_mlp_forward_impl.1} parent=1 // pred_check_branch
      %49 = sbr.rel (0) target = $region29
    $region28: #{_mlp_forward_impl.1} parent=1 // pred_region
      _
    $region29: #{_mlp_forward_impl.1} parent=1 // pred_fallthru
      _
    // Predicated region
    $region30: #{_mlp_forward_impl.1} parent=1 // pred_check
      _
    $region31: #{_mlp_forward_impl.1} parent=1 // pred_check_branch
      %51 = sbr.rel (0) target = $region33
    $region32: #{_mlp_forward_impl.1} parent=1 // pred_region
      %53 = dma.done [#allocation3], 1024
    $region33: #{_mlp_forward_impl.1} parent=1 // pred_fallthru
      _
    // Predicated region
    $region34: #{_mlp_forward_impl.1} parent=1 // pred_check
      _
    $region35: #{_mlp_forward_impl.1} parent=1 // pred_check_branch
      %55 = sbr.rel (0) target = $region37
    $region36: #{_mlp_forward_impl.1} parent=1 // pred_region
      %57 = dma.done [#allocation5], 1024
    $region37: #{_mlp_forward_impl.1} parent=1 // pred_fallthru
      _
    %v59 = vld [vmem:[%s0] sm:$0xff]
    %v60 = vpack.c.bf16 %v59, %v59
    %v61 = vld [vmem:[%s1] sm:$0x1]
    %v62 = vld [vmem:[%s2] sm:$0x1]
    %v64 = vperm.slane %v62, 0
    %vm66 = vcmask 15360
    %v68 = vsel %vm66, %v60, 0
    %vm70 = vcmask 1040384
    %v72 = vsel %vm70, %v61, 0
    %74 = vmatpush.bf16.msra.mxu0 0
    %75 = vmatpush.bf16.msra.mxu0 0
    %76 = vmatpush.bf16.msra.mxu0 0
    %77 = vmatpush.bf16.msra.mxu0 0
    %78 = vmatpush.bf16.msra.mxu0 0
    %79 = vmatpush.bf16.msra.mxu0 0
    %80 = vmatpush.bf16.msra.mxu0 0
    %81 = vmatpush.bf16.msra.mxu0 %v72
    %82 = vmatmul.bf16.gmra.mxu0 %v68
    %v83 = vpop.f32.mrf.mxu0
    %v84 = vadd.f32 %v64, %v83
    %v85 = vpop.f32.mrf.mxu0
    %86 = vdwg.mxu0
    %v87 = vmax.f32 %v84, 0.0
    %v88 = vpack.c.bf16 %v87, %v87
    %v89 = vld [vmem:[#allocation2] sm:$0xf]
    %v90 = vld [vmem:[#allocation2 + $0x4] sm:$0xf]
    %v91 = vld [vmem:[#allocation2 + $0x8] sm:$0xf]
    %v92 = vld [vmem:[#allocation2 + $0xc] sm:$0xf]
    %v93 = vld [vmem:[#allocation2 + $0x10] sm:$0xf]
    %v94 = vld [vmem:[#allocation2 + $0x14] sm:$0xf]
    %v95 = vld [vmem:[#allocation2 + $0x18] sm:$0xf]
    %v96 = vld [vmem:[#allocation2 + $0x1c] sm:$0xf]
    %v97 = vld [vmem:[#allocation2 + $0x20] sm:$0xf]
    %v98 = vld [vmem:[#allocation2 + $0x24] sm:$0xf]
    %v99 = vld [vmem:[#allocation2 + $0x28] sm:$0xf]
    %v100 = vld [vmem:[#allocation2 + $0x2c] sm:$0xf]
    %v101 = vld [vmem:[#allocation2 + $0x30] sm:$0xf]
    %v102 = vld [vmem:[#allocation2 + $0x34] sm:$0xf]
    %v103 = vld [vmem:[#allocation2 + $0x38] sm:$0xf]
    %v104 = vld [vmem:[#allocation2 + $0x3c] sm:$0xf]
    %v105 = vld [vmem:[%s4] sm:$0x1]
    %v107 = vperm.slane %v105, 0
    %v125 = vunpack.c.l.b16 %v89
    %v126 = vunpack.c.l.b16 %v90
    %v127 = vunpack.c.l.b16 %v91
    %v128 = vunpack.c.l.b16 %v92
    %v129 = vunpack.c.l.b16 %v93
    %v130 = vunpack.c.l.b16 %v94
    %v131 = vunpack.c.l.b16 %v95
    %v132 = vunpack.c.l.b16 %v96
    %v133 = vunpack.c.l.b16 %v97
    %v134 = vunpack.c.l.b16 %v98
    %v135 = vunpack.c.l.b16 %v99
    %v136 = vunpack.c.l.b16 %v100
    %v137 = vunpack.c.l.b16 %v101
    %v138 = vunpack.c.l.b16 %v102
    %v139 = vunpack.c.l.b16 %v103
    %v140 = vunpack.c.l.b16 %v104
    %v141 = vpack.c.b16 %v126, %v125
    %v142 = vpack.c.b16 %v128, %v127
    %v143 = vpack.c.b16 %v130, %v129
    %v144 = vpack.c.b16 %v132, %v131
    %v145 = vpack.c.b16 %v134, %v133
    %v146 = vpack.c.b16 %v136, %v135
    %v147 = vpack.c.b16 %v138, %v137
    %v148 = vpack.c.b16 %v140, %v139
    %157 = vmatpush.bf16.msra.mxu0 %v148
    %158 = vmatpush.bf16.msra.mxu0 %v147
    %159 = vmatpush.bf16.msra.mxu0 %v146
    %160 = vmatpush.bf16.msra.mxu0 %v145
    %161 = vmatpush.bf16.msra.mxu0 %v144
    %162 = vmatpush.bf16.msra.mxu0 %v143
    %163 = vmatpush.bf16.msra.mxu0 %v142
    %164 = vmatpush.bf16.msra.mxu0 %v141
    %165 = vmatmul.bf16.gmra.mxu0 %v88
    %v166 = vpop.f32.mrf.mxu0
    %v167 = vadd.f32 %v107, %v166
    %v168 = vpop.f32.mrf.mxu0
    %169 = vdwg.mxu0
    %v170 = vmax.f32 %v167, 0.0
    %v171 = vpack.c.bf16 %v170, %v170
    %v172 = vld [vmem:[#allocation4] sm:$0xf]
    %v173 = vld [vmem:[#allocation4 + $0x4] sm:$0xf]
    %v174 = vld [vmem:[#allocation4 + $0x8] sm:$0xf]
    %v175 = vld [vmem:[#allocation4 + $0xc] sm:$0xf]
    %v176 = vld [vmem:[#allocation4 + $0x10] sm:$0xf]
    %v177 = vld [vmem:[#allocation4 + $0x14] sm:$0xf]
    %v178 = vld [vmem:[#allocation4 + $0x18] sm:$0xf]
    %v179 = vld [vmem:[#allocation4 + $0x1c] sm:$0xf]
    %v180 = vld [vmem:[#allocation4 + $0x20] sm:$0xf]
    %v181 = vld [vmem:[#allocation4 + $0x24] sm:$0xf]
    %v182 = vld [vmem:[#allocation4 + $0x28] sm:$0xf]
    %v183 = vld [vmem:[#allocation4 + $0x2c] sm:$0xf]
    %v184 = vld [vmem:[#allocation4 + $0x30] sm:$0xf]
    %v185 = vld [vmem:[#allocation4 + $0x34] sm:$0xf]
    %v186 = vld [vmem:[#allocation4 + $0x38] sm:$0xf]
    %v187 = vld [vmem:[#allocation4 + $0x3c] sm:$0xf]
    %v188 = vld [vmem:[%s6] sm:$0x1]
    %v190 = vperm.slane %v188, 0
    %v208 = vunpack.c.l.b16 %v172
    %v209 = vunpack.c.l.b16 %v173
    %v210 = vunpack.c.l.b16 %v174
    %v211 = vunpack.c.l.b16 %v175
    %v212 = vunpack.c.l.b16 %v176
    %v213 = vunpack.c.l.b16 %v177
    %v214 = vunpack.c.l.b16 %v178
    %v215 = vunpack.c.l.b16 %v179
    %v216 = vunpack.c.l.b16 %v180
    %v217 = vunpack.c.l.b16 %v181
    %v218 = vunpack.c.l.b16 %v182
    %v219 = vunpack.c.l.b16 %v183
    %v220 = vunpack.c.l.b16 %v184
    %v221 = vunpack.c.l.b16 %v185
    %v222 = vunpack.c.l.b16 %v186
    %v223 = vunpack.c.l.b16 %v187
    %v224 = vpack.c.b16 %v209, %v208
    %v225 = vpack.c.b16 %v211, %v210
    %v226 = vpack.c.b16 %v213, %v212
    %v227 = vpack.c.b16 %v215, %v214
    %v228 = vpack.c.b16 %v217, %v216
    %v229 = vpack.c.b16 %v219, %v218
    %v230 = vpack.c.b16 %v221, %v220
    %v231 = vpack.c.b16 %v223, %v222
    %240 = vmatpush.bf16.msra.mxu0 %v231
    %241 = vmatpush.bf16.msra.mxu0 %v230
    %242 = vmatpush.bf16.msra.mxu0 %v229
    %243 = vmatpush.bf16.msra.mxu0 %v228
    %244 = vmatpush.bf16.msra.mxu0 %v227
    %245 = vmatpush.bf16.msra.mxu0 %v226
    %246 = vmatpush.bf16.msra.mxu0 %v225
    %247 = vmatpush.bf16.msra.mxu0 %v224
    %248 = vmatmul.bf16.gmra.mxu0 %v171
    %v249 = vpop.f32.mrf.mxu0
    %v250 = vadd.f32 %v190, %v249
    %v251 = vpop.f32.mrf.mxu0
    %252 = vdwg.mxu0
    %v253 = vmax.f32 %v250, 0.0
    %254 = vst [vmem:[%s7] sm:$0xff] %v253
    // Predicated region
    $region38: #{_mlp_forward_impl.1} parent=1 // pred_check
      _
    $region39: #{_mlp_forward_impl.1} parent=1 // pred_check_branch
      %256 = sbr.rel (0) target = $region41
    $region40: #{_mlp_forward_impl.1} parent=1 // pred_region
      _
    $region41: #{_mlp_forward_impl.1} parent=1 // pred_fallthru
      _
    // Predicated region
    $region42: #{_mlp_forward_impl.1} parent=1 // pred_check
      _
    $region43: #{_mlp_forward_impl.1} parent=1 // pred_check_branch
      %258 = sbr.rel (0) target = $region45
    $region44: #{_mlp_forward_impl.1} parent=1 // pred_region
      _
    $region45: #{_mlp_forward_impl.1} parent=1 // pred_fallthru
      _
    %259 = vsyncpa [#allocation3], 1
    %260 = vsyncpa [#allocation5], 1

</llo_original>
